<compile_context>
chip_gen: v7x
topology: tpu7x:2x2x1
jax: 0.10.0
libtpu: 0.0.40
codegen_flags: <defaults>
</compile_context>

<pallas_src>
import jax
import jax.numpy as jnp
from jax.experimental import pallas as pl
from jax.experimental.pallas import tpu as pltpu

EPS = 1e-5
COMPUTE_DTYPE = jnp.bfloat16  # MXU input dtype; accumulation is always f32.


# ----------------------------------------------------------------------------
# Pass 1: h = x @ w1 (bf16 out) + per-tile partial BN statistics.
# ----------------------------------------------------------------------------
def _matmul_stats_kernel(x_ref, w1_ref, h_ref, sum_ref, ssq_ref):
    h = jnp.dot(x_ref[...].astype(COMPUTE_DTYPE), w1_ref[...],
                preferred_element_type=jnp.float32)
    h_ref[...] = h.astype(h_ref.dtype)            # bf16 h handed to pass 2
    tm, hid = h.shape
    # [tm, H] -> [tm//8, 8, H] keeps lane/sublane layout intact, so the axis-0
    # reduction is pure VPU adds; the final [8,H]->[1,H] cross-sublane reduce
    # (and rsqrt) happens once, in the tiny JAX finalize.
    hp = h.reshape(tm // 8, 8, hid)
    sum_ref[...] = jnp.sum(hp, axis=0)
    ssq_ref[...] = jnp.sum(hp * hp, axis=0)


# ----------------------------------------------------------------------------
# Pass 2: out = relu(h * scale + shift) @ w2 + b2   per batch tile.
# ----------------------------------------------------------------------------
def _apply_kernel(h_ref, scale_ref, shift_ref, w2_ref, b2_ref, o_ref):
    h = h_ref[...].astype(jnp.float32)
    h = jnp.maximum(h * scale_ref[...] + shift_ref[...], 0.0)  # fused BN+ReLU
    out = jnp.dot(h.astype(COMPUTE_DTYPE), w2_ref[...],
                  preferred_element_type=jnp.float32) + b2_ref[...]
    o_ref[...] = out.astype(o_ref.dtype)


# ----------------------------------------------------------------------------
# Wrapper helpers
# ----------------------------------------------------------------------------
def _pick_batch_tile(batch):
    # Aim for >= 8 grid steps (input/output double-buffering overlap and, on
    # v7x, megacore sharding of the "parallel" batch axis) while keeping each
    # tile a sublane multiple; cap at 512 rows (~85% of HBM roofline already).
    tm = -(-batch // 8)              # ceil(B / 8)
    tm = max(8, min(512, tm))
    return -(-tm // 8) * 8           # round up to a sublane multiple


def _vmem_limit_bytes(tm, d_in, hidden, d_out):
    bf16, f32 = 2, 4
    # Pallas double-buffers EVERY BlockSpec'd operand (constant-index weight
    # blocks included), so count them 2x.
    pass1 = (2 * tm * d_in * f32            # x tiles
             + 2 * d_in * hidden * bf16     # w1
             + 2 * tm * hidden * bf16       # h output tiles
             + 2 * 2 * 8 * hidden * f32     # per-tile sum/ssq outputs
             + tm * hidden * f32)           # f32 h intermediate
    pass2 = (2 * tm * hidden * bf16         # h tiles
             + 2 * hidden * d_out * bf16    # w2
             + 2 * 2 * hidden * f32         # scale/shift
             + 2 * d_out * f32              # b2
             + 2 * tm * d_out * f32         # out tiles
             + tm * hidden * f32)           # f32 intermediate
    est = int(max(pass1, pass2) * 1.5)      # headroom for compiler temporaries
    try:  # generation-aware cap (v7x: 64 MiB physical; v5e/v6e: 128 MiB)
        cap = int(pltpu.get_tpu_info().vmem_capacity_bytes * 0.85)
    except Exception:
        cap = 54 * 1024 * 1024              # conservative (fits v7x)
    return max(min(est, cap), 32 * 1024 * 1024)


# ----------------------------------------------------------------------------
# Public entry point
# ----------------------------------------------------------------------------
def projection_head(x, w1, gamma, beta, w2, b2, *, block_m=None):
    """x: [B, D_in] f32. w1: [D_in, H], w2: [H, D_out] (pre-transposed vs
    PyTorch's [out, in]); gamma/beta: BatchNorm1d params; b2: second-linear
    bias.  Returns [B, D_out], matching ProjectionHead forward (training-mode
    BN with batch statistics, biased variance, eps=1e-5).

    Note: the MXU consumes bf16 inputs (f32 accumulation); BN statistics are
    computed in f32 on the matmul output.  This deviates from PyTorch's pure
    f32 path at roughly bf16 rounding level (~1e-2 abs at unit scale)."""
    B, d_in = x.shape
    hidden = w1.shape[1]
    d_out = w2.shape[1]

    gamma = gamma.reshape(1, hidden).astype(jnp.float32)
    beta = beta.reshape(1, hidden).astype(jnp.float32)
    b2 = b2.reshape(1, d_out).astype(jnp.float32)
    w1_c = w1.astype(COMPUTE_DTYPE)   # one-time tiny cast; resident in VMEM
    w2_c = w2.astype(COMPUTE_DTYPE)

    tm = block_m if block_m is not None else _pick_batch_tile(B)
    tm = -(-tm // 8) * 8
    n_tiles = -(-B // tm)
    b_pad = n_tiles * tm
    if b_pad != B:
        # Zero rows contribute nothing to sum/ssq; stats divide by the true B.
        x = jnp.concatenate([x, jnp.zeros((b_pad - B, d_in), x.dtype)], axis=0)

    itemsize = jnp.dtype(x.dtype).itemsize
    vmem_limit = _vmem_limit_bytes(tm, d_in, hidden, d_out)
    grid = (n_tiles,)

    x_spec = pl.BlockSpec((tm, d_in), lambda i: (i, 0))
    w1_spec = pl.BlockSpec((d_in, hidden), lambda i: (0, 0))
    w2_spec = pl.BlockSpec((hidden, d_out), lambda i: (0, 0))
    vec_h_spec = pl.BlockSpec((1, hidden), lambda i: (0, 0))
    vec_o_spec = pl.BlockSpec((1, d_out), lambda i: (0, 0))
    h_spec = pl.BlockSpec((tm, hidden), lambda i: (i, 0))
    part_spec = pl.BlockSpec((8, hidden), lambda i: (i, 0))
    out_spec = pl.BlockSpec((tm, d_out), lambda i: (i, 0))

    # ---- pass 1: h = x @ w1 (bf16) + per-tile partial stats ("parallel") ---
    h, psum, pssq = pl.pallas_call(
        _matmul_stats_kernel,
        out_shape=(jax.ShapeDtypeStruct((b_pad, hidden), COMPUTE_DTYPE),
                   jax.ShapeDtypeStruct((n_tiles * 8, hidden), jnp.float32),
                   jax.ShapeDtypeStruct((n_tiles * 8, hidden), jnp.float32)),
        grid_spec=pltpu.PrefetchScalarGridSpec(
            num_scalar_prefetch=0,
            grid=grid,
            in_specs=[x_spec, w1_spec],
            out_specs=(h_spec, part_spec, part_spec)),
        compiler_params=pltpu.CompilerParams(
            dimension_semantics=("parallel",),
            vmem_limit_bytes=vmem_limit),
        cost_estimate=pl.CostEstimate(
            flops=2 * b_pad * d_in * hidden + 3 * b_pad * hidden,
            transcendentals=0,
            bytes_accessed=(b_pad * d_in * itemsize + d_in * hidden * 2
                            + b_pad * hidden * 2 + 2 * n_tiles * 8 * hidden * 4)),
    )(x, w1_c)

    # ---- tiny batch-global finalize in plain JAX (fused scale/shift) -------
    inv_n = 1.0 / float(B)
    mean = psum.sum(axis=0, keepdims=True) * inv_n
    # Biased variance (PyTorch BatchNorm1d training-mode normalization).
    var = jnp.maximum(pssq.sum(axis=0, keepdims=True) * inv_n - mean * mean, 0.0)
    scale = gamma * jax.lax.rsqrt(var + EPS)
    shift = beta - mean * scale

    # ---- pass 2: relu(h*scale+shift) @ w2 + b2, batch-parallel --------------
    out = pl.pallas_call(
        _apply_kernel,
        out_shape=jax.ShapeDtypeStruct((b_pad, d_out), x.dtype),
        grid_spec=pltpu.PrefetchScalarGridSpec(
            num_scalar_prefetch=0,
            grid=grid,
            in_specs=[h_spec, vec_h_spec, vec_h_spec, w2_spec, vec_o_spec],
            out_specs=out_spec),
        compiler_params=pltpu.CompilerParams(
            dimension_semantics=("parallel",),
            vmem_limit_bytes=vmem_limit),
        cost_estimate=pl.CostEstimate(
            flops=2 * b_pad * hidden * d_out + 3 * b_pad * hidden,
            transcendentals=0,
            bytes_accessed=(b_pad * hidden * 2 + hidden * d_out * 2
                            + 2 * hidden * 4 + d_out * 4
                            + b_pad * d_out * itemsize)),
    )(h, scale, shift, w2_c, b2)

    return out if b_pad == B else out[:B]


# ----------------------------------------------------------------------------
# Pure-JAX reference (faithful f32 PyTorch semantics, training-mode BN).
# ----------------------------------------------------------------------------
def reference(x, w1, gamma, beta, w2, b2):
    h = x @ w1
    mean = h.mean(axis=0, keepdims=True)
    var = ((h - mean) ** 2).mean(axis=0, keepdims=True)   # biased variance
    h = (h - mean) / jnp.sqrt(var + EPS)
    h = h * gamma + beta
    h = jnp.maximum(h, 0.0)
    return h @ w2 + b2


if __name__ == "__main__":
    # Lane-dense shapes matching the module docstring example:
    #   (256, 256, BatchNorm1d, ReLU), (256, 128, None, None)
    B, D_IN, HIDDEN, D_OUT = 128, 256, 256, 128

    key = jax.random.PRNGKey(0)
    kx, kw1, kw2, kb2 = jax.random.split(key, 4)

    x = jax.random.normal(kx, (B, D_IN), dtype=jnp.float32)
    w1 = jax.random.uniform(kw1, (D_IN, HIDDEN), minval=-1.0, maxval=1.0,
                            dtype=jnp.float32) / jnp.sqrt(D_IN)
    gamma = jnp.ones((HIDDEN,), dtype=jnp.float32)   # BatchNorm1d weight
    beta = jnp.zeros((HIDDEN,), dtype=jnp.float32)   # BatchNorm1d bias
    w2 = jax.random.uniform(kw2, (HIDDEN, D_OUT), minval=-1.0, maxval=1.0,
                            dtype=jnp.float32) / jnp.sqrt(HIDDEN)
    b2 = jax.random.uniform(kb2, (1, D_OUT), minval=-1.0, maxval=1.0,
                            dtype=jnp.float32) / jnp.sqrt(HIDDEN)

    out = jax.block_until_ready(projection_head(x, w1, gamma, beta, w2, b2))

    ref = reference(x, w1, gamma.reshape(1, -1), beta.reshape(1, -1), w2, b2)
    assert out.shape == (B, D_OUT)
    max_err = float(jnp.max(jnp.abs(out - ref)))
    assert jnp.allclose(out, ref, atol=5e-2, rtol=5e-2), (
        f"mismatch vs JAX reference, max|err|={max_err}")

    print("KERNEL_OK")
</pallas_src>

<mosaic_0001>
module attributes {stable_mosaic.version = 11 : i64} {
  func.func @_matmul_stats_kernel(%arg0: i32, %arg1: memref<16x256xf32, #tpu.memory_space<vmem>>, %arg2: memref<256x256xbf16, #tpu.memory_space<vmem>>, %arg3: memref<16x256xbf16, #tpu.memory_space<vmem>>, %arg4: memref<8x256xf32, #tpu.memory_space<vmem>>, %arg5: memref<8x256xf32, #tpu.memory_space<vmem>>) attributes {dimension_semantics = [#tpu.dimension_semantics<parallel>], iteration_bounds = array<i64: 8>, scalar_prefetch = 0 : i64, scratch_operands = 0 : i64, tpu.core_type = #tpu.core_type<tc>, window_params = [{transform_indices = @transform_0, window_bounds = array<i64: 16, 256>}, {pipeline_mode = #tpu.pipeline_mode<synchronous>, transform_indices = @transform_1, window_bounds = array<i64: 256, 256>}, {transform_indices = @transform_2, window_bounds = array<i64: 16, 256>}, {transform_indices = @transform_3, window_bounds = array<i64: 8, 256>}, {transform_indices = @transform_4, window_bounds = array<i64: 8, 256>}]} {
    %c0 = arith.constant 0 : index
    %c0_0 = arith.constant 0 : index
    %0 = vector.load %arg1[%c0, %c0_0] : memref<16x256xf32, #tpu.memory_space<vmem>>, vector<16x256xf32>
    %1 = arith.truncf %0 : vector<16x256xf32> to vector<16x256xbf16>
    %c0_1 = arith.constant 0 : index
    %c0_2 = arith.constant 0 : index
    %2 = vector.load %arg2[%c0_1, %c0_2] : memref<256x256xbf16, #tpu.memory_space<vmem>>, vector<256x256xbf16>
    %cst = arith.constant dense<0.000000e+00> : vector<16x256xf32>
    %3 = tpu.matmul %1, %2, %cst {dimension_numbers = #tpu.dot_dimension_numbers<[1], [0], [0], [1], [0, 0, 1, 1], [], []>} : vector<16x256xbf16>, vector<256x256xbf16>, vector<16x256xf32> -> vector<16x256xf32>
    %4 = arith.truncf %3 : vector<16x256xf32> to vector<16x256xbf16>
    %c0_3 = arith.constant 0 : index
    %c0_4 = arith.constant 0 : index
    %5 = vector.load %arg3[%c0_3, %c0_4] : memref<16x256xbf16, #tpu.memory_space<vmem>>, vector<16x256xbf16>
    tpu.vector_store %arg3[%c0_3, %c0_4], %4 {strides = array<i32>} : memref<16x256xbf16, #tpu.memory_space<vmem>>, vector<16x256xbf16>,
    %6 = vector.shape_cast %3 : vector<16x256xf32> to vector<2x8x256xf32>
    %cst_5 = arith.constant dense<0.000000e+00> : vector<8x256xf32>
    %7 = vector.multi_reduction <add>, %6, %cst_5 [0] : vector<2x8x256xf32> to vector<8x256xf32>
    %c0_6 = arith.constant 0 : index
    %c0_7 = arith.constant 0 : index
    %8 = vector.load %arg4[%c0_6, %c0_7] : memref<8x256xf32, #tpu.memory_space<vmem>>, vector<8x256xf32>
    tpu.vector_store %arg4[%c0_6, %c0_7], %7 {strides = array<i32>} : memref<8x256xf32, #tpu.memory_space<vmem>>, vector<8x256xf32>,
    %9 = arith.mulf %6, %6 : vector<2x8x256xf32>
    %cst_8 = arith.constant dense<0.000000e+00> : vector<8x256xf32>
    %10 = vector.multi_reduction <add>, %9, %cst_8 [0] : vector<2x8x256xf32> to vector<8x256xf32>
    %c0_9 = arith.constant 0 : index
    %c0_10 = arith.constant 0 : index
    %11 = vector.load %arg5[%c0_9, %c0_10] : memref<8x256xf32, #tpu.memory_space<vmem>>, vector<8x256xf32>
    tpu.vector_store %arg5[%c0_9, %c0_10], %10 {strides = array<i32>} : memref<8x256xf32, #tpu.memory_space<vmem>>, vector<8x256xf32>,
    return
  }
  func.func @transform_0(%arg0: i32) -> (i32, i32) {
    %c0_i32 = arith.constant 0 : i32
    %c0_i32_0 = arith.constant 0 : i32
    return %arg0, %c0_i32 : i32, i32
  }
  func.func @transform_1(%arg0: i32) -> (i32, i32) {
    %c0_i32 = arith.constant 0 : i32
    %c0_i32_0 = arith.constant 0 : i32
    %c0_i32_1 = arith.constant 0 : i32
    return %c0_i32, %c0_i32_0 : i32, i32
  }
  func.func @transform_2(%arg0: i32) -> (i32, i32) {
    %c0_i32 = arith.constant 0 : i32
    %c0_i32_0 = arith.constant 0 : i32
    return %arg0, %c0_i32 : i32, i32
  }
  func.func @transform_3(%arg0: i32) -> (i32, i32) {
    %c0_i32 = arith.constant 0 : i32
    %c0_i32_0 = arith.constant 0 : i32
    return %arg0, %c0_i32 : i32, i32
  }
  func.func @transform_4(%arg0: i32) -> (i32, i32) {
    %c0_i32 = arith.constant 0 : i32
    %c0_i32_0 = arith.constant 0 : i32
    return %arg0, %c0_i32 : i32, i32
  }
}

</mosaic_0001>

<llo_original>
// kernel: tpu_custom_call.1
$region0: #{tpu_custom_call.1}
  #allocation0 [shape = 'u32[]', space=smem, size = 0x4, offset = 0x4, fixed_abs, tag = 'smem constant byte address 0x4 - core index']
  #allocation1 [shape = 'u32[144,128]{1,0:T(1,128)}', space=vmem, size = 0x12000, scoped, tag = 'internal scratch']
  %s0 = inlined_call_operand.hbm [shape: f32[128,256], index: 0, kind: input, shape index: {}]
  %s1 = inlined_call_operand.hbm [shape: bf16[256,256], index: 1, kind: input, shape index: {}]
  %s2 = inlined_call_operand.hbm [shape: bf16[128,256], index: 2, kind: output, shape index: {0}]
  %s3 = inlined_call_operand.hbm [shape: f32[64,256], index: 3, kind: output, shape index: {1}]
  %s4 = inlined_call_operand.hbm [shape: f32[64,256], index: 4, kind: output, shape index: {2}]
  %5 = xla_tuple %s2, %s3, %s4
  %s6 = sld [smem:[#allocation0]]
  $region65: #{tpu_custom_call.1} parent=0
    _
  %s8 = ssub.s32 1, %s6
  %s9 = scalar_select 0, %s8, %s6
  $region1: #{tpu_custom_call.1} parent=0
    #allocation2 [shape = 'u8[32768]{0}', space=vmem, size = 0x8000, scoped, tag = 'input window, operand 0']
    #allocation3 [shape = 's32[2]{0}', space=sflag, size = 0x8, scoped, tag = 'scoped memory for tpu_custom_call.1']
    #allocation4 [shape = 's32[2]{0}', space=sflag, size = 0x8, scoped, tag = 'scoped memory for tpu_custom_call.1']
    #allocation5 [shape = 'u8[131072]{0}', space=vmem, size = 0x20000, scoped, tag = 'input window, operand 1, single buffered']
    #allocation6 [shape = 's32[1]{0}', space=sflag, size = 0x4, scoped, tag = 'scoped memory for tpu_custom_call.1']
    #allocation7 [shape = 'u8[16384]{0}', space=vmem, size = 0x4000, scoped, tag = 'output window, operand 0']
    #allocation8 [shape = 'u8[16384]{0}', space=vmem, size = 0x4000, scoped, tag = 'output window, operand 1']
    #allocation9 [shape = 's32[2]{0}', space=sflag, size = 0x8, scoped, tag = 'scoped memory for tpu_custom_call.1']
    #allocation10 [shape = 'u8[16384]{0}', space=vmem, size = 0x4000, scoped, tag = 'output window, operand 2']
    %10 = vsyncpa [#allocation3], 0
    %s11 = scalar_lea.sflag [#allocation3], 1
    %12 = vsyncpa %s11, 0
    %13 = vsyncpa [#allocation6], 0
    %14 = vsyncpa [#allocation4], 0
    %s15 = scalar_lea.sflag [#allocation4], 1
    %16 = vsyncpa %s15, 0
    %17 = vsyncpa [#allocation9], 0
    %s18 = scalar_lea.sflag [#allocation9], 1
    %19 = vsyncpa %s18, 0
    loop: start=0, step=1, limit=10
    $region2: #{tpu_custom_call.1} parent=1 // loop_pre_header
      _
    $region3: #{tpu_custom_call.1} parent=1 // loop_header
      %s21 = sphi 0, %s25
      %p22 = scmp.ge.s32.totalorder %s21, 10
      %s31 = sphi 0, %s33
      %s34 = sphi 0, %s31
      %s35 = sphi 0, %s34
      %s51 = sphi 0, %s35
      %s55 = sphi 0, %s55
      %s57 = sphi 0, %s55
      %s58 = sphi 0, %s57
      %s72 = sphi 0, %s58
      %s78 = sphi 0, %s80
      %s81 = sphi 0, %s78
      %s82 = sphi 0, %s81
      %s98 = sphi 0, %s82
      %s104 = sphi 0, %s106
      %s107 = sphi 0, %s104
      %s108 = sphi 0, %s107
      %s124 = sphi 0, %s108
      %s130 = sphi 0, %s132
      %s133 = sphi 0, %s130
      %s134 = sphi 0, %s133
      %s150 = sphi 0, %s134
    $region4: #{tpu_custom_call.1} parent=1 // loop_header_branch
      %24 = sbr.rel (%p22) target = $region8
    $region5: #{tpu_custom_call.1} parent=1 // loop_body
      %s26 = ssub.s32 %s21, 1
      %s27 = ssub.s32 %s21, 2
      %s28 = sadd.s32 %s21, 1
      %s29 = ssub.s32 %s21, %s28
      %p30 = scmp.eq.s32.totalorder %s29, 0
      %s32 = sadd.s32 %s31, 1
      %s33 = scalar_select %p30, %s31, %s32
      %p36 = pneg %p30
      %p37 = scmp.eq.s32.totalorder %s21, 7
      %p38 = por %p36, %p37
      %p39 = scmp.ne.s32.totalorder %s31, %s34
      %p40 = scmp.eq.s32.totalorder %s21, 0
      %p41 = por %p39, %p40
      %p42 = scmp.ne.s32.totalorder %s31, %s34
      %p43 = scmp.eq.s32.totalorder %s26, 7
      %p44 = por %p42, %p43
      %p45 = scmp.ne.s32.totalorder %s34, %s35
      %p46 = scmp.eq.s32.totalorder %s26, 0
      %p47 = por %p45, %p46
      %p48 = scmp.ne.s32.totalorder %s34, %s35
      %p49 = scmp.eq.s32.totalorder %s27, 7
      %p50 = por %p48, %p49
      %p52 = scmp.ne.s32.totalorder %s35, %s51
      %p53 = scmp.eq.s32.totalorder %s27, 0
      %p54 = por %p52, %p53
      %s56 = sadd.s32 %s55, 1
      %p59 = scmp.eq.s32.totalorder %s21, 7
      %p60 = scmp.ne.s32.totalorder %s55, %s57
      %p61 = scmp.eq.s32.totalorder %s21, 0
      %p62 = por %p60, %p61
      %p63 = scmp.ne.s32.totalorder %s55, %s57
      %p64 = scmp.eq.s32.totalorder %s26, 7
      %p65 = por %p63, %p64
      %p66 = scmp.ne.s32.totalorder %s57, %s58
      %p67 = scmp.eq.s32.totalorder %s26, 0
      %p68 = por %p66, %p67
      %p69 = scmp.ne.s32.totalorder %s57, %s58
      %p70 = scmp.eq.s32.totalorder %s27, 7
      %p71 = por %p69, %p70
      %p73 = scmp.ne.s32.totalorder %s58, %s72
      %p74 = scmp.eq.s32.totalorder %s27, 0
      %p75 = por %p73, %p74
      %s76 = ssub.s32 %s21, %s28
      %p77 = scmp.eq.s32.totalorder %s76, 0
      %s79 = sadd.s32 %s78, 1
      %s80 = scalar_select %p77, %s78, %s79
      %p83 = pneg %p77
      %p84 = scmp.eq.s32.totalorder %s21, 7
      %p85 = por %p83, %p84
      %p86 = scmp.ne.s32.totalorder %s78, %s81
      %p87 = scmp.eq.s32.totalorder %s21, 0
      %p88 = por %p86, %p87
      %p89 = scmp.ne.s32.totalorder %s78, %s81
      %p90 = scmp.eq.s32.totalorder %s26, 7
      %p91 = por %p89, %p90
      %p92 = scmp.ne.s32.totalorder %s81, %s82
      %p93 = scmp.eq.s32.totalorder %s26, 0
      %p94 = por %p92, %p93
      %p95 = scmp.ne.s32.totalorder %s81, %s82
      %p96 = scmp.eq.s32.totalorder %s27, 7
      %p97 = por %p95, %p96
      %p99 = scmp.ne.s32.totalorder %s82, %s98
      %p100 = scmp.eq.s32.totalorder %s27, 0
      %p101 = por %p99, %p100
      %s102 = ssub.s32 %s21, %s28
      %p103 = scmp.eq.s32.totalorder %s102, 0
      %s105 = sadd.s32 %s104, 1
      %s106 = scalar_select %p103, %s104, %s105
      %p109 = pneg %p103
      %p110 = scmp.eq.s32.totalorder %s21, 7
      %p111 = por %p109, %p110
      %p112 = scmp.ne.s32.totalorder %s104, %s107
      %p113 = scmp.eq.s32.totalorder %s21, 0
      %p114 = por %p112, %p113
      %p115 = scmp.ne.s32.totalorder %s104, %s107
      %p116 = scmp.eq.s32.totalorder %s26, 7
      %p117 = por %p115, %p116
      %p118 = scmp.ne.s32.totalorder %s107, %s108
      %p119 = scmp.eq.s32.totalorder %s26, 0
      %p120 = por %p118, %p119
      %p121 = scmp.ne.s32.totalorder %s107, %s108
      %p122 = scmp.eq.s32.totalorder %s27, 7
      %p123 = por %p121, %p122
      %p125 = scmp.ne.s32.totalorder %s108, %s124
      %p126 = scmp.eq.s32.totalorder %s27, 0
      %p127 = por %p125, %p126
      %s128 = ssub.s32 %s21, %s28
      %p129 = scmp.eq.s32.totalorder %s128, 0
      %s131 = sadd.s32 %s130, 1
      %s132 = scalar_select %p129, %s130, %s131
      %p135 = pneg %p129
      %p136 = scmp.eq.s32.totalorder %s21, 7
      %p137 = por %p135, %p136
      %p138 = scmp.ne.s32.totalorder %s130, %s133
      %p139 = scmp.eq.s32.totalorder %s21, 0
      %p140 = por %p138, %p139
      %p141 = scmp.ne.s32.totalorder %s130, %s133
      %p142 = scmp.eq.s32.totalorder %s26, 7
      %p143 = por %p141, %p142
      %p144 = scmp.ne.s32.totalorder %s133, %s134
      %p145 = scmp.eq.s32.totalorder %s26, 0
      %p146 = por %p144, %p145
      %p147 = scmp.ne.s32.totalorder %s133, %s134
      %p148 = scmp.eq.s32.totalorder %s27, 7
      %p149 = por %p147, %p148
      %p151 = scmp.ne.s32.totalorder %s134, %s150
      %p152 = scmp.eq.s32.totalorder %s27, 0
      %p153 = por %p151, %p152
      %p154 = scmp.le.s32.totalorder 1, %s21
      %p155 = scmp.lt.s32.totalorder %s21, 9
      %p156 = pnand %p154, %p155
      %p157 = pneg %p156
      // Predicated region
      $region9: #{tpu_custom_call.1} parent=5 // pred_check
        _
      $region10: #{tpu_custom_call.1} parent=5 // pred_check_branch
        %159 = sbr.rel (%p156) target = $region12
      $region11: #{tpu_custom_call.1} parent=5 // pred_region
        %s160 = ssub.s32 %s21, 1
        // Predicated region
        $region13: #{tpu_custom_call.1} parent=11 // pred_check
          %p161 = pneg %p68
        $region14: #{tpu_custom_call.1} parent=11 // pred_check_branch
          %163 = sbr.rel (%p161) target = $region16
        $region15: #{tpu_custom_call.1} parent=11 // pred_region
          %s165 = ssub.s32 4096, 4096
          %166 = vsyncadd [#allocation6], %s165
          %s167 = sshll.u32 [#allocation5], 4
          %s168 = int_to_ptr.vmem [resolvable:$true] %s167
          %173 = dma.hbm_to_vmem [thread:$0]  %s1, 4096, %s168, [#allocation6], 128, 128, 8
        $region16: #{tpu_custom_call.1} parent=11 // pred_fallthru
          _
      $region12: #{tpu_custom_call.1} parent=5 // pred_fallthru
        _
      %p174 = scmp.lt.s32.totalorder %s21, 8
      // Predicated region
      $region17: #{tpu_custom_call.1} parent=5 // pred_check
        %p175 = pneg %p174
      $region18: #{tpu_custom_call.1} parent=5 // pred_check_branch
        %177 = sbr.rel (%p175) target = $region20
      $region19: #{tpu_custom_call.1} parent=5 // pred_region
        // Predicated region
        $region21: #{tpu_custom_call.1} parent=19 // pred_check
          %p178 = pneg %p41
        $region22: #{tpu_custom_call.1} parent=19 // pred_check_branch
          %180 = sbr.rel (%p178) target = $region24
        $region23: #{tpu_custom_call.1} parent=19 // pred_region
          %s181 = sand.u32 %s31, 1
          %s182 = scalar_lea.sflag [#allocation3], %s181
          %s183 = sand.u32 %s31, 1
          %s184 = smul.addr %s183, 32
          %s185 = scalar_lea.vmem [#allocation2], %s184
          %s186 = smul.u32 2, %s21
          %s188 = ssub.s32 512, 512
          %189 = vsyncadd %s182, %s188
          %s190 = smul.addr %s186, 2
          %s191 = smul.addr %s190, 128
          %s192 = scalar_lea.hbm %s0, %s191
          %s193 = sshll.u32 %s185, 4
          %s194 = int_to_ptr.vmem [resolvable:$true] %s193
          %199 = dma.hbm_to_vmem [thread:$0]  %s192, 512, %s194, %s182, 256, 256, 16
        $region24: #{tpu_custom_call.1} parent=19 // pred_fallthru
          _
      $region20: #{tpu_custom_call.1} parent=5 // pred_fallthru
        _
      %p200 = scmp.le.s32.totalorder 1, %s21
      %p201 = scmp.lt.s32.totalorder %s21, 9
      %p202 = pnand %p200, %p201
      %p203 = pneg %p202
      // Predicated region
      $region25: #{tpu_custom_call.1} parent=5 // pred_check
        _
      $region26: #{tpu_custom_call.1} parent=5 // pred_check_branch
        %205 = sbr.rel (%p202) target = $region28
      $region27: #{tpu_custom_call.1} parent=5 // pred_region
        %s206 = ssub.s32 %s21, 1
        %s207 = sand.u32 %s34, 1
        %s208 = scalar_lea.sflag [#allocation3], %s207
        %s209 = sand.u32 %s34, 1
        %s210 = smul.addr %s209, 32
        %s211 = scalar_lea.vmem [#allocation2], %s210
        // Predicated region
        $region29: #{tpu_custom_call.1} parent=27 // pred_check
          %p212 = pneg %p47
        $region30: #{tpu_custom_call.1} parent=27 // pred_check_branch
          %214 = sbr.rel (%p212) target = $region32
        $region31: #{tpu_custom_call.1} parent=27 // pred_region
          %215 = dma.done %s208, 512
        $region32: #{tpu_custom_call.1} parent=27 // pred_fallthru
          _
        // Predicated region
        $region33: #{tpu_custom_call.1} parent=27 // pred_check
          %p216 = pneg %p68
        $region34: #{tpu_custom_call.1} parent=27 // pred_check_branch
          %218 = sbr.rel (%p216) target = $region36
        $region35: #{tpu_custom_call.1} parent=27 // pred_region
          %219 = dma.done [#allocation6], 4096
        $region36: #{tpu_custom_call.1} parent=27 // pred_fallthru
          _
        %s220 = sand.u32 %s34, 1
        %s221 = scalar_lea.sflag [#allocation3], %s220
        %s222 = sand.u32 %s34, 1
        %s223 = smul.addr %s222, 32
        %s224 = scalar_lea.vmem [#allocation2], %s223
        %p225 = pneg %p47
        %p226 = pneg %p44
        %p227 = pneg %p68
        %p228 = pneg %p65
        %p229 = pneg %p94
        %p230 = pneg %p91
        %s231 = sand.u32 %s81, 1
        %s232 = scalar_lea.sflag [#allocation4], %s231
        %s233 = sand.u32 %s81, 1
        %s234 = smul.addr %s233, 16
        %s235 = scalar_lea.vmem [#allocation7], %s234
        %p236 = pneg %p120
        %p237 = pneg %p117
        %s238 = sand.u32 %s26, 1
        %s239 = scalar_lea.sflag [#allocation9], %s238
        %s240 = sand.u32 %s107, 1
        %s241 = smul.addr %s240, 16
        %s242 = scalar_lea.vmem [#allocation8], %s241
        %p243 = pneg %p146
        %p244 = pneg %p143
        %s245 = sand.u32 %s26, 1
        %s246 = scalar_lea.sflag [#allocation9], %s245
        %s247 = sand.u32 %s133, 1
        %s248 = smul.addr %s247, 16
        %s249 = scalar_lea.vmem [#allocation10], %s248
        %s250 = smul.u32 2, %s26
        %s251 = smul.u32 2, %s26
        %v252 = vld [vmem:[%s211] sm:$0xff]
        %v253 = vld [vmem:[%s211 + $0x8] sm:$0xff]
        %v254 = vld [vmem:[%s211 + $0x10] sm:$0xff]
        %v255 = vld [vmem:[%s211 + $0x18] sm:$0xff]
        %v256 = vpack.c.bf16 %v254, %v252
        %v257 = vpack.c.bf16 %v255, %v253
        %v258 = vld [vmem:[#allocation5] sm:$0xff]
        %v259 = vld [vmem:[#allocation5 + $0x8] sm:$0xff]
        %v260 = vld [vmem:[#allocation5 + $0x10] sm:$0xff]
        %v261 = vld [vmem:[#allocation5 + $0x18] sm:$0xff]
        %v262 = vld [vmem:[#allocation5 + $0x20] sm:$0xff]
        %v263 = vld [vmem:[#allocation5 + $0x28] sm:$0xff]
        %v264 = vld [vmem:[#allocation5 + $0x30] sm:$0xff]
        %v265 = vld [vmem:[#allocation5 + $0x38] sm:$0xff]
        %v266 = vld [vmem:[#allocation5 + $0x40] sm:$0xff]
        %v267 = vld [vmem:[#allocation5 + $0x48] sm:$0xff]
        %v268 = vld [vmem:[#allocation5 + $0x50] sm:$0xff]
        %v269 = vld [vmem:[#allocation5 + $0x58] sm:$0xff]
        %v270 = vld [vmem:[#allocation5 + $0x60] sm:$0xff]
        %v271 = vld [vmem:[#allocation5 + $0x68] sm:$0xff]
        %v272 = vld [vmem:[#allocation5 + $0x70] sm:$0xff]
        %v273 = vld [vmem:[#allocation5 + $0x78] sm:$0xff]
        %v274 = vld [vmem:[#allocation5 + $0x80] sm:$0xff]
        %v275 = vld [vmem:[#allocation5 + $0x88] sm:$0xff]
        %v276 = vld [vmem:[#allocation5 + $0x90] sm:$0xff]
        %v277 = vld [vmem:[#allocation5 + $0x98] sm:$0xff]
        %v278 = vld [vmem:[#allocation5 + $0xa0] sm:$0xff]
        %v279 = vld [vmem:[#allocation5 + $0xa8] sm:$0xff]
        %v280 = vld [vmem:[#allocation5 + $0xb0] sm:$0xff]
        %v281 = vld [vmem:[#allocation5 + $0xb8] sm:$0xff]
        %v282 = vld [vmem:[#allocation5 + $0xc0] sm:$0xff]
        %v283 = vld [vmem:[#allocation5 + $0xc8] sm:$0xff]
        %v284 = vld [vmem:[#allocation5 + $0xd0] sm:$0xff]
        %v285 = vld [vmem:[#allocation5 + $0xd8] sm:$0xff]
        %v286 = vld [vmem:[#allocation5 + $0xe0] sm:$0xff]
        %v287 = vld [vmem:[#allocation5 + $0xe8] sm:$0xff]
        %v288 = vld [vmem:[#allocation5 + $0xf0] sm:$0xff]
        %v289 = vld [vmem:[#allocation5 + $0xf8] sm:$0xff]
        %v322 = vunpack.c.l.b16 %v258
        %v323 = vunpack.c.h.b16 %v258
        %v324 = vunpack.c.l.b16 %v259
        %v325 = vunpack.c.h.b16 %v259
        %v326 = vunpack.c.l.b16 %v260
        %v327 = vunpack.c.h.b16 %v260
        %v328 = vunpack.c.l.b16 %v261
        %v329 = vunpack.c.h.b16 %v261
        %v330 = vunpack.c.l.b16 %v262
        %v331 = vunpack.c.h.b16 %v262
        %v332 = vunpack.c.l.b16 %v263
        %v333 = vunpack.c.h.b16 %v263
        %v334 = vunpack.c.l.b16 %v264
        %v335 = vunpack.c.h.b16 %v264
        %v336 = vunpack.c.l.b16 %v265
        %v337 = vunpack.c.h.b16 %v265
        %v338 = vunpack.c.l.b16 %v266
        %v339 = vunpack.c.h.b16 %v266
        %v340 = vunpack.c.l.b16 %v267
        %v341 = vunpack.c.h.b16 %v267
        %v342 = vunpack.c.l.b16 %v268
        %v343 = vunpack.c.h.b16 %v268
        %v344 = vunpack.c.l.b16 %v269
        %v345 = vunpack.c.h.b16 %v269
        %v346 = vunpack.c.l.b16 %v270
        %v347 = vunpack.c.h.b16 %v270
        %v348 = vunpack.c.l.b16 %v271
        %v349 = vunpack.c.h.b16 %v271
        %v350 = vunpack.c.l.b16 %v272
        %v351 = vunpack.c.h.b16 %v272
        %v352 = vunpack.c.l.b16 %v273
        %v353 = vunpack.c.h.b16 %v273
        %v354 = vunpack.c.l.b16 %v274
        %v355 = vunpack.c.h.b16 %v274
        %v356 = vunpack.c.l.b16 %v275
        %v357 = vunpack.c.h.b16 %v275
        %v358 = vunpack.c.l.b16 %v276
        %v359 = vunpack.c.h.b16 %v276
        %v360 = vunpack.c.l.b16 %v277
        %v361 = vunpack.c.h.b16 %v277
        %v362 = vunpack.c.l.b16 %v278
        %v363 = vunpack.c.h.b16 %v278
        %v364 = vunpack.c.l.b16 %v279
        %v365 = vunpack.c.h.b16 %v279
        %v366 = vunpack.c.l.b16 %v280
        %v367 = vunpack.c.h.b16 %v280
        %v368 = vunpack.c.l.b16 %v281
        %v369 = vunpack.c.h.b16 %v281
        %v370 = vunpack.c.l.b16 %v282
        %v371 = vunpack.c.h.b16 %v282
        %v372 = vunpack.c.l.b16 %v283
        %v373 = vunpack.c.h.b16 %v283
        %v374 = vunpack.c.l.b16 %v284
        %v375 = vunpack.c.h.b16 %v284
        %v376 = vunpack.c.l.b16 %v285
        %v377 = vunpack.c.h.b16 %v285
        %v378 = vunpack.c.l.b16 %v286
        %v379 = vunpack.c.h.b16 %v286
        %v380 = vunpack.c.l.b16 %v287
        %v381 = vunpack.c.h.b16 %v287
        %v382 = vunpack.c.l.b16 %v288
        %v383 = vunpack.c.h.b16 %v288
        %v384 = vunpack.c.l.b16 %v289
        %v385 = vunpack.c.h.b16 %v289
        %v386 = vpack.c.b16 %v324, %v322
        %v387 = vpack.c.b16 %v325, %v323
        %v388 = vpack.c.b16 %v328, %v326
        %v389 = vpack.c.b16 %v329, %v327
        %v390 = vpack.c.b16 %v332, %v330
        %v391 = vpack.c.b16 %v333, %v331
        %v392 = vpack.c.b16 %v336, %v334
        %v393 = vpack.c.b16 %v337, %v335
        %v394 = vpack.c.b16 %v340, %v338
        %v395 = vpack.c.b16 %v341, %v339
        %v396 = vpack.c.b16 %v344, %v342
        %v397 = vpack.c.b16 %v345, %v343
        %v398 = vpack.c.b16 %v348, %v346
        %v399 = vpack.c.b16 %v349, %v347
        %v400 = vpack.c.b16 %v352, %v350
        %v401 = vpack.c.b16 %v353, %v351
        %v402 = vpack.c.b16 %v356, %v354
        %v403 = vpack.c.b16 %v357, %v355
        %v404 = vpack.c.b16 %v360, %v358
        %v405 = vpack.c.b16 %v361, %v359
        %v406 = vpack.c.b16 %v364, %v362
        %v407 = vpack.c.b16 %v365, %v363
        %v408 = vpack.c.b16 %v368, %v366
        %v409 = vpack.c.b16 %v369, %v367
        %v410 = vpack.c.b16 %v372, %v370
        %v411 = vpack.c.b16 %v373, %v371
        %v412 = vpack.c.b16 %v376, %v374
        %v413 = vpack.c.b16 %v377, %v375
        %v414 = vpack.c.b16 %v380, %v378
        %v415 = vpack.c.b16 %v381, %v379
        %v416 = vpack.c.b16 %v384, %v382
        %v417 = vpack.c.b16 %v385, %v383
        %450 = vmatprep.subr.bf16.mxu0 %v387
        %451 = vmatpush1.bf16.msra.mxu0 %v386
        %452 = vmatprep.subr.bf16.mxu0 %v389
        %453 = vmatpush1.bf16.msra.mxu0 %v388
        %454 = vmatprep.subr.bf16.mxu0 %v391
        %455 = vmatpush1.bf16.msra.mxu0 %v390
        %456 = vmatprep.subr.bf16.mxu0 %v393
        %457 = vmatpush1.bf16.msra.mxu0 %v392
        %458 = vmatprep.subr.bf16.mxu0 %v395
        %459 = vmatpush1.bf16.msra.mxu0 %v394
        %460 = vmatprep.subr.bf16.mxu0 %v397
        %461 = vmatpush1.bf16.msra.mxu0 %v396
        %462 = vmatprep.subr.bf16.mxu0 %v399
        %463 = vmatpush1.bf16.msra.mxu0 %v398
        %464 = vmatprep.subr.bf16.mxu0 %v401
        %465 = vmatpush1.bf16.msra.mxu0 %v400
        %466 = vmatprep.subr.bf16.mxu0 %v403
        %467 = vmatpush1.bf16.msra.mxu0 %v402
        %468 = vmatprep.subr.bf16.mxu0 %v405
        %469 = vmatpush1.bf16.msra.mxu0 %v404
        %470 = vmatprep.subr.bf16.mxu0 %v407
        %471 = vmatpush1.bf16.msra.mxu0 %v406
        %472 = vmatprep.subr.bf16.mxu0 %v409
        %473 = vmatpush1.bf16.msra.mxu0 %v408
        %474 = vmatprep.subr.bf16.mxu0 %v411
        %475 = vmatpush1.bf16.msra.mxu0 %v410
        %476 = vmatprep.subr.bf16.mxu0 %v413
        %477 = vmatpush1.bf16.msra.mxu0 %v412
        %478 = vmatprep.subr.bf16.mxu0 %v415
        %479 = vmatpush1.bf16.msra.mxu0 %v414
        %480 = vmatprep.subr.bf16.mxu0 %v417
        %481 = vmatpush1.bf16.msra.mxu0 %v416
        %482 = vmatprep.mubr.bf16.mxu0 %v257
        %483 = vmatmul.mubr.bf16.gmra.mrb[0].mxu0 %v256
        %v484 = vpop.f32.mrb[0].mxu0
        %v485 = vadd.f32 0.0, %v484
        %v486 = vpop.f32.mrb[0].mxu0
        %v487 = vadd.f32 0.0, %v486
        %v488 = vpop.f32.mrb[0].mxu0
        %v489 = vadd.f32 0.0, %v488
        %v490 = vpop.f32.mrb[0].mxu0
        %v491 = vadd.f32 0.0, %v490
        %492 = vdwg.mxu0
        %v493 = vpack.c.bf16 %v489, %v485
        %v494 = vpack.c.bf16 %v491, %v487
        %v497 = vunpack.c.l.b16 %v493
        %v498 = vunpack.c.l.b16 %v494
        %v499 = vunpack.c.h.b16 %v493
        %v500 = vunpack.c.h.b16 %v494
        %v501 = vpack.c.b16 %v498, %v497
        %v502 = vpack.c.b16 %v500, %v499
        %505 = vst [vmem:[%s235] sm:$0xff] %v501
        %506 = vst [vmem:[%s235 + $0x8] sm:$0xff] %v502
        %v507 = vadd.f32 %v485, %v489
        %v508 = vadd.f32 %v487, %v491
        %509 = vst [vmem:[%s242] sm:$0xff] %v507
        %510 = vst [vmem:[%s242 + $0x8] sm:$0xff] %v508
        %v511 = vmul.f32 %v485, %v485
        %v512 = vmul.f32 %v487, %v487
        %v513 = vmul.f32 %v489, %v489
        %v514 = vmul.f32 %v491, %v491
        %v515 = vadd.f32 %v511, %v513
        %v516 = vadd.f32 %v512, %v514
        %517 = vst [vmem:[%s249] sm:$0xff] %v515
        %518 = vst [vmem:[%s249 + $0x8] sm:$0xff] %v516
        %s519 = sand.u32 %s81, 1
        %s520 = scalar_lea.sflag [#allocation4], %s519
        %s521 = sand.u32 %s81, 1
        %s522 = smul.addr %s521, 16
        %s523 = scalar_lea.vmem [#allocation7], %s522
        %s524 = sand.u32 %s26, 1
        %s525 = scalar_lea.sflag [#allocation9], %s524
        %s526 = sand.u32 %s107, 1
        %s527 = smul.addr %s526, 16
        %s528 = scalar_lea.vmem [#allocation8], %s527
        %s529 = sand.u32 %s26, 1
        %s530 = scalar_lea.sflag [#allocation9], %s529
        %s531 = sand.u32 %s133, 1
        %s532 = smul.addr %s531, 16
        %s533 = scalar_lea.vmem [#allocation10], %s532
        // Predicated region
        $region37: #{tpu_custom_call.1} parent=27 // pred_check
          %p534 = pneg %p91
        $region38: #{tpu_custom_call.1} parent=27 // pred_check_branch
          %536 = sbr.rel (%p534) target = $region40
        $region39: #{tpu_custom_call.1} parent=27 // pred_region
          %s537 = smul.u32 2, %s26
          %s539 = ssub.s32 256, 256
          %540 = vsyncadd %s520, %s539
          %s541 = smul.addr %s537, 2
          %s542 = smul.addr %s541, 64
          %s543 = scalar_lea.hbm %s2, %s542
          %s544 = sshll.u32 %s523, 4
          %s545 = int_to_ptr.vmem [resolvable:$true] %s544
          %550 = dma.vmem_to_hbm [thread:$0]  %s545, 256, %s543, %s520, 128, 128, 8
        $region40: #{tpu_custom_call.1} parent=27 // pred_fallthru
          _
        // Predicated region
        $region41: #{tpu_custom_call.1} parent=27 // pred_check
          %p551 = pneg %p117
        $region42: #{tpu_custom_call.1} parent=27 // pred_check_branch
          %553 = sbr.rel (%p551) target = $region44
        $region43: #{tpu_custom_call.1} parent=27 // pred_region
          %s555 = ssub.s32 256, 256
          %556 = vsyncadd %s525, %s555
          %s557 = smul.addr %s26, 2
          %s558 = smul.addr %s557, 128
          %s559 = scalar_lea.hbm %s3, %s558
          %s561 = sshll.u32 %s528, 4
          %s562 = int_to_ptr.vmem [resolvable:$true] %s561
          %564 = dma.vmem_to_hbm [thread:$0]  %s562, 256, %s559, %s525
        $region44: #{tpu_custom_call.1} parent=27 // pred_fallthru
          _
        // Predicated region
        $region45: #{tpu_custom_call.1} parent=27 // pred_check
          %p565 = pneg %p143
        $region46: #{tpu_custom_call.1} parent=27 // pred_check_branch
          %567 = sbr.rel (%p565) target = $region48
        $region47: #{tpu_custom_call.1} parent=27 // pred_region
          %s569 = ssub.s32 256, 256
          %570 = vsyncadd %s530, %s569
          %s571 = smul.addr %s26, 2
          %s572 = smul.addr %s571, 128
          %s573 = scalar_lea.hbm %s4, %s572
          %s575 = sshll.u32 %s533, 4
          %s576 = int_to_ptr.vmem [resolvable:$true] %s575
          %578 = dma.vmem_to_hbm [thread:$0]  %s576, 256, %s573, %s530
        $region48: #{tpu_custom_call.1} parent=27 // pred_fallthru
          _
      $region28: #{tpu_custom_call.1} parent=5 // pred_fallthru
        _
      %p579 = scmp.le.s32.totalorder 2, %s21
      // Predicated region
      $region49: #{tpu_custom_call.1} parent=5 // pred_check
        %p580 = pneg %p579
      $region50: #{tpu_custom_call.1} parent=5 // pred_check_branch
        %582 = sbr.rel (%p580) target = $region52
      $region51: #{tpu_custom_call.1} parent=5 // pred_region
        %s583 = ssub.s32 %s21, 2
        // Predicated region
        $region53: #{tpu_custom_call.1} parent=51 // pred_check
          %p584 = pneg %p97
        $region54: #{tpu_custom_call.1} parent=51 // pred_check_branch
          %586 = sbr.rel (%p584) target = $region56
        $region55: #{tpu_custom_call.1} parent=51 // pred_region
          %s587 = sand.u32 %s82, 1
          %s588 = scalar_lea.sflag [#allocation4], %s587
          %s589 = sand.u32 %s82, 1
          %s590 = smul.addr %s589, 16
          %s591 = scalar_lea.vmem [#allocation7], %s590
          %592 = dma.done %s588, 256
        $region56: #{tpu_custom_call.1} parent=51 // pred_fallthru
          _
        // Predicated region
        $region57: #{tpu_custom_call.1} parent=51 // pred_check
          %p593 = pneg %p123
        $region58: #{tpu_custom_call.1} parent=51 // pred_check_branch
          %595 = sbr.rel (%p593) target = $region60
        $region59: #{tpu_custom_call.1} parent=51 // pred_region
          %s596 = sand.u32 %s27, 1
          %s597 = scalar_lea.sflag [#allocation9], %s596
          %s598 = sand.u32 %s108, 1
          %s599 = smul.addr %s598, 16
          %s600 = scalar_lea.vmem [#allocation8], %s599
          %601 = dma.done %s597, 256
        $region60: #{tpu_custom_call.1} parent=51 // pred_fallthru
          _
        // Predicated region
        $region61: #{tpu_custom_call.1} parent=51 // pred_check
          %p602 = pneg %p149
        $region62: #{tpu_custom_call.1} parent=51 // pred_check_branch
          %604 = sbr.rel (%p602) target = $region64
        $region63: #{tpu_custom_call.1} parent=51 // pred_region
          %s605 = sand.u32 %s27, 1
          %s606 = scalar_lea.sflag [#allocation9], %s605
          %s607 = sand.u32 %s134, 1
          %s608 = smul.addr %s607, 16
          %s609 = scalar_lea.vmem [#allocation10], %s608
          %610 = dma.done %s606, 256
        $region64: #{tpu_custom_call.1} parent=51 // pred_fallthru
          _
      $region52: #{tpu_custom_call.1} parent=5 // pred_fallthru
        _
    $region6: #{tpu_custom_call.1} parent=1 // loop_footer
      %s25 = sadd.s32 1, %s21
    $region7: #{tpu_custom_call.1} parent=1 // loop_footer_branch
      %20 = sbr.rel target = $region3
    $region8: #{tpu_custom_call.1} parent=1 // loop_exit
      _
    %611 = vsyncpa [#allocation3], 1
    %s612 = scalar_lea.sflag [#allocation3], 1
    %613 = vsyncpa %s612, 1
    %614 = vsyncpa [#allocation6], 1
    %615 = vsyncpa [#allocation4], 1
    %s616 = scalar_lea.sflag [#allocation4], 1
    %617 = vsyncpa %s616, 1
    %618 = vsyncpa [#allocation9], 1
    %s619 = scalar_lea.sflag [#allocation9], 1
    %620 = vsyncpa %s619, 1

</llo_original>
